<compile_context>
chip_gen: v7x
topology: tpu7x:2x2x1
jax: 0.10.0
libtpu: 0.0.40
codegen_flags: <defaults>
</compile_context>

<pallas_src>
import functools

import jax
import jax.numpy as jnp
from jax.experimental import pallas as pl
from jax.experimental.pallas import tpu as pltpu

HIDDEN = 16    # lin1 out_features
OUT = 32       # lin2 out_features
H_PAD = 128    # hidden lane-padded width (full vreg / MXU lane tile)


def _round_up(x, m):
    return ((x + m - 1) // m) * m


def _cdiv(a, b):
    return (a + b - 1) // b


def mlp_kernel(x_ref, w1_ref, b1_ref, w2_ref, b2_ref, o_ref):
    x = x_ref[...]                                              # (tb, D)

    # lin1 + ReLU -> (tb, 128). Padded hidden lanes (zero weights + zero bias)
    # stay exactly 0 through ReLU, so they contribute nothing in lin2.
    h = jnp.dot(x, w1_ref[...], preferred_element_type=jnp.float32) + b1_ref[...]
    h = jnp.maximum(h, 0.0)

    # lin2 -> (tb, 32). True output width: no padded logit lanes, 4x less
    # HBM writeback than a 128-wide padded store.
    z = jnp.dot(h, w2_ref[...], preferred_element_type=jnp.float32) + b2_ref[...]

    # Numerically stable log_softmax over the 32 real lanes only.
    m = jnp.max(z, axis=-1, keepdims=True)
    lse = m + jnp.log(jnp.sum(jnp.exp(z - m), axis=-1, keepdims=True))
    o_ref[...] = (z - lse).astype(o_ref.dtype)


def prepare_params(w1, b1, w2, b2):
    """One-time lane-padding of the (tiny) parameters.

    Hoisted out of the per-call forward so the pad ops don't re-run on every
    inference.  w* are stored as (in_features, out_features), i.e. already
    transposed relative to nn.Linear's weight, so the kernel computes x @ W + b.
    """
    D = w1.shape[0]
    w1p = jnp.zeros((D, H_PAD), jnp.float32).at[:, :HIDDEN].set(w1.astype(jnp.float32))
    b1p = jnp.zeros((1, H_PAD), jnp.float32).at[:, :HIDDEN].set(
        b1.reshape(1, HIDDEN).astype(jnp.float32))
    w2p = jnp.zeros((H_PAD, OUT), jnp.float32).at[:HIDDEN, :].set(w2.astype(jnp.float32))
    b2p = b2.reshape(1, OUT).astype(jnp.float32)
    return w1p, b1p, w2p, b2p


def _pick_tb(B):
    # Small batch: one grid step covering the whole batch (block == full batch
    # dim, so the (8,128) divisibility rule is satisfied and nothing is padded).
    if B <= 256:
        return B
    # Larger batch: guarantee >= 2 grid steps so the "parallel" axis actually
    # shards across v7x's two TensorCores; 128-row granularity is enough on
    # every generation; cap at 2048 rows (per-step overhead already amortized,
    # double-buffered VMEM footprint ~1 MiB).
    return min(2048, _round_up(_cdiv(B, 2), 128))


@functools.partial(jax.jit, static_argnames=("tb",))
def net_forward(x, w1p, b1p, w2p, b2p, tb=None):
    B, D = x.shape
    if tb is None:
        tb = _pick_tb(B)
    # Partial last block is masked by Pallas: no jnp.pad pass over x, no
    # dead-row writeback.
    grid = (_cdiv(B, tb),)

    cost = pl.CostEstimate(
        flops=2 * B * (D * H_PAD + H_PAD * OUT),
        transcendentals=B * (OUT + 1),                  # exp + log per row
        bytes_accessed=4 * (B * D + B * OUT
                            + D * H_PAD + H_PAD * OUT + H_PAD + OUT),
    )

    return pl.pallas_call(
        mlp_kernel,
        out_shape=jax.ShapeDtypeStruct((B, OUT), jnp.float32),
        grid=grid,
        in_specs=[
            pl.BlockSpec((tb, D), lambda i: (i, 0)),          # x: row-tiled, pipelined
            pl.BlockSpec((D, H_PAD), lambda i: (0, 0)),       # w1: resident in VMEM
            pl.BlockSpec((1, H_PAD), lambda i: (0, 0)),       # b1: resident
            pl.BlockSpec((H_PAD, OUT), lambda i: (0, 0)),     # w2: resident
            pl.BlockSpec((1, OUT), lambda i: (0, 0)),         # b2: resident
        ],
        out_specs=pl.BlockSpec((tb, OUT), lambda i: (i, 0)),  # true-width writeback
        compiler_params=pltpu.CompilerParams(
            dimension_semantics=("parallel",),                # v7x: shard across 2 TCs
        ),
        cost_estimate=cost,
    )(x, w1p, b1p, w2p, b2p)


def init_params(key, dim):
    # Deterministic init mimicking nn.Linear default: U(-1/sqrt(fan_in), ...).
    k1, k2, k3, k4 = jax.random.split(key, 4)
    lim1 = 1.0 / jnp.sqrt(jnp.float32(dim))
    lim2 = 1.0 / jnp.sqrt(jnp.float32(HIDDEN))
    w1 = jax.random.uniform(k1, (dim, HIDDEN), jnp.float32, -lim1, lim1)
    b1 = jax.random.uniform(k2, (1, HIDDEN), jnp.float32, -lim1, lim1)
    w2 = jax.random.uniform(k3, (HIDDEN, OUT), jnp.float32, -lim2, lim2)
    b2 = jax.random.uniform(k4, (1, OUT), jnp.float32, -lim2, lim2)
    return w1, b1, w2, b2


def _reference(x, w1, b1, w2, b2):
    h = jnp.maximum(x @ w1 + b1, 0.0)
    z = h @ w2 + b2
    return jax.nn.log_softmax(z, axis=-1)


if __name__ == "__main__":
    key = jax.random.PRNGKey(0)
    kx, kp, kx2 = jax.random.split(key, 3)

    batch, dim = 8, 32
    x = jax.random.normal(kx, (batch, dim), jnp.float32)
    w1, b1, w2, b2 = init_params(kp, dim)
    params = prepare_params(w1, b1, w2, b2)          # one-time padding

    # Small-batch path (single grid step, block == full batch dim).
    out = net_forward(x, *params)
    jax.block_until_ready(out)
    ref = _reference(x, w1, b1, w2, b2)
    assert out.shape == (batch, OUT)
    assert jnp.allclose(out, ref, atol=1e-5), "mismatch vs JAX reference (small batch)"

    # Multi-step grid with a partial (masked) last block: B=300, tb=128 -> grid=(3,).
    batch2 = 300
    x2 = jax.random.normal(kx2, (batch2, dim), jnp.float32)
    out2 = net_forward(x2, *params, tb=128)
    jax.block_until_ready(out2)
    ref2 = _reference(x2, w1, b1, w2, b2)
    assert out2.shape == (batch2, OUT)
    assert jnp.allclose(out2, ref2, atol=1e-5), "mismatch vs JAX reference (tb=128 grid)"

    # Default heuristic path (>= 2 grid steps, partial last block, no jnp.pad).
    out3 = net_forward(x2, *params)
    jax.block_until_ready(out3)
    assert jnp.allclose(out3, ref2, atol=1e-5), "mismatch vs JAX reference (default tb)"

    print("KERNEL_OK")
</pallas_src>

<mosaic_0001>
module attributes {stable_mosaic.version = 11 : i64} {
  func.func @mlp_kernel(%arg0: i32, %arg1: memref<8x32xf32, #tpu.memory_space<vmem>>, %arg2: memref<32x128xf32, #tpu.memory_space<vmem>>, %arg3: memref<1x128xf32, #tpu.memory_space<vmem>>, %arg4: memref<128x32xf32, #tpu.memory_space<vmem>>, %arg5: memref<1x32xf32, #tpu.memory_space<vmem>>, %arg6: memref<8x32xf32, #tpu.memory_space<vmem>>) attributes {dimension_semantics = [#tpu.dimension_semantics<parallel>], iteration_bounds = array<i64: 1>, scalar_prefetch = 0 : i64, scratch_operands = 0 : i64, tpu.core_type = #tpu.core_type<tc>, window_params = [{transform_indices = @transform_0, window_bounds = array<i64: 8, 32>}, {pipeline_mode = #tpu.pipeline_mode<synchronous>, transform_indices = @transform_1, window_bounds = array<i64: 32, 128>}, {pipeline_mode = #tpu.pipeline_mode<synchronous>, transform_indices = @transform_2, window_bounds = array<i64: 1, 128>}, {pipeline_mode = #tpu.pipeline_mode<synchronous>, transform_indices = @transform_3, window_bounds = array<i64: 128, 32>}, {pipeline_mode = #tpu.pipeline_mode<synchronous>, transform_indices = @transform_4, window_bounds = array<i64: 1, 32>}, {transform_indices = @transform_5, window_bounds = array<i64: 8, 32>}]} {
    %c0 = arith.constant 0 : index
    %c0_0 = arith.constant 0 : index
    %0 = vector.load %arg1[%c0, %c0_0] : memref<8x32xf32, #tpu.memory_space<vmem>>, vector<8x32xf32>
    %c0_1 = arith.constant 0 : index
    %c0_2 = arith.constant 0 : index
    %1 = vector.load %arg2[%c0_1, %c0_2] : memref<32x128xf32, #tpu.memory_space<vmem>>, vector<32x128xf32>
    %cst = arith.constant dense<0.000000e+00> : vector<8x128xf32>
    %2 = tpu.matmul %0, %1, %cst {dimension_numbers = #tpu.dot_dimension_numbers<[1], [0], [0], [1], [0, 0, 1, 1], [], []>} : vector<8x32xf32>, vector<32x128xf32>, vector<8x128xf32> -> vector<8x128xf32>
    %c0_3 = arith.constant 0 : index
    %c0_4 = arith.constant 0 : index
    %3 = vector.load %arg3[%c0_3, %c0_4] : memref<1x128xf32, #tpu.memory_space<vmem>>, vector<1x128xf32>
    %4 = vector.broadcast %3 : vector<1x128xf32> to vector<8x128xf32>
    %5 = arith.addf %2, %4 : vector<8x128xf32>
    %cst_5 = arith.constant 0.000000e+00 : f32
    %6 = vector.broadcast %cst_5 : f32 to vector<8x128xf32>
    %7 = arith.maximumf %5, %6 : vector<8x128xf32>
    %c0_6 = arith.constant 0 : index
    %c0_7 = arith.constant 0 : index
    %8 = vector.load %arg4[%c0_6, %c0_7] : memref<128x32xf32, #tpu.memory_space<vmem>>, vector<128x32xf32>
    %cst_8 = arith.constant dense<0.000000e+00> : vector<8x32xf32>
    %9 = tpu.matmul %7, %8, %cst_8 {dimension_numbers = #tpu.dot_dimension_numbers<[1], [0], [0], [1], [0, 0, 1, 1], [], []>} : vector<8x128xf32>, vector<128x32xf32>, vector<8x32xf32> -> vector<8x32xf32>
    %c0_9 = arith.constant 0 : index
    %c0_10 = arith.constant 0 : index
    %10 = vector.load %arg5[%c0_9, %c0_10] : memref<1x32xf32, #tpu.memory_space<vmem>>, vector<1x32xf32>
    %11 = vector.broadcast %10 : vector<1x32xf32> to vector<8x32xf32>
    %12 = arith.addf %9, %11 : vector<8x32xf32>
    %cst_11 = arith.constant dense<0xFF800000> : vector<8xf32>
    %13 = vector.multi_reduction <maximumf>, %12, %cst_11 [1] : vector<8x32xf32> to vector<8xf32>
    %14 = vector.shape_cast %13 : vector<8xf32> to vector<8x1xf32>
    %15 = vector.broadcast %14 : vector<8x1xf32> to vector<8x32xf32>
    %16 = arith.subf %12, %15 : vector<8x32xf32>
    %17 = math.exp %16 : vector<8x32xf32>
    %cst_12 = arith.constant dense<0.000000e+00> : vector<8xf32>
    %18 = vector.multi_reduction <add>, %17, %cst_12 [1] : vector<8x32xf32> to vector<8xf32>
    %19 = vector.shape_cast %18 : vector<8xf32> to vector<8x1xf32>
    %20 = math.log %19 : vector<8x1xf32>
    %21 = arith.addf %14, %20 : vector<8x1xf32>
    %22 = vector.broadcast %21 : vector<8x1xf32> to vector<8x32xf32>
    %23 = arith.subf %12, %22 : vector<8x32xf32>
    %c0_13 = arith.constant 0 : index
    %c0_14 = arith.constant 0 : index
    %24 = vector.load %arg6[%c0_13, %c0_14] : memref<8x32xf32, #tpu.memory_space<vmem>>, vector<8x32xf32>
    tpu.vector_store %arg6[%c0_13, %c0_14], %23 {strides = array<i32>} : memref<8x32xf32, #tpu.memory_space<vmem>>, vector<8x32xf32>,
    return
  }
  func.func @transform_0(%arg0: i32) -> (i32, i32) {
    %c0_i32 = arith.constant 0 : i32
    %c0_i32_0 = arith.constant 0 : i32
    return %arg0, %c0_i32 : i32, i32
  }
  func.func @transform_1(%arg0: i32) -> (i32, i32) {
    %c0_i32 = arith.constant 0 : i32
    %c0_i32_0 = arith.constant 0 : i32
    %c0_i32_1 = arith.constant 0 : i32
    return %c0_i32, %c0_i32_0 : i32, i32
  }
  func.func @transform_2(%arg0: i32) -> (i32, i32) {
    %c0_i32 = arith.constant 0 : i32
    %c0_i32_0 = arith.constant 0 : i32
    %c0_i32_1 = arith.constant 0 : i32
    return %c0_i32, %c0_i32_0 : i32, i32
  }
  func.func @transform_3(%arg0: i32) -> (i32, i32) {
    %c0_i32 = arith.constant 0 : i32
    %c0_i32_0 = arith.constant 0 : i32
    %c0_i32_1 = arith.constant 0 : i32
    return %c0_i32, %c0_i32_0 : i32, i32
  }
  func.func @transform_4(%arg0: i32) -> (i32, i32) {
    %c0_i32 = arith.constant 0 : i32
    %c0_i32_0 = arith.constant 0 : i32
    %c0_i32_1 = arith.constant 0 : i32
    return %c0_i32, %c0_i32_0 : i32, i32
  }
  func.func @transform_5(%arg0: i32) -> (i32, i32) {
    %c0_i32 = arith.constant 0 : i32
    %c0_i32_0 = arith.constant 0 : i32
    return %arg0, %c0_i32 : i32, i32
  }
}

</mosaic_0001>

<llo_original>
// kernel: net_forward.1
$region0: #{net_forward.1}
  #allocation0 [shape = 'u32[]', space=smem, size = 0x4, offset = 0x4, fixed_abs, tag = 'smem constant byte address 0x4 - core index']
  #allocation1 [shape = 'u32[144,128]{1,0:T(1,128)}', space=vmem, size = 0x12000, scoped, tag = 'internal scratch']
  %s0 = inlined_call_operand.vmem [shape: f32[8,32], index: 0, kind: input, shape index: {}]
  %s1 = inlined_call_operand.vmem [shape: f32[32,128], index: 1, kind: input, shape index: {}]
  %s2 = inlined_call_operand.vmem [shape: f32[1,128], index: 2, kind: input, shape index: {}]
  %s3 = inlined_call_operand.vmem [shape: f32[128,32], index: 3, kind: input, shape index: {}]
  %s4 = inlined_call_operand.vmem [shape: f32[1,32], index: 4, kind: input, shape index: {}]
  %s5 = inlined_call_operand.hbm [shape: f32[8,32], index: 5, kind: output, shape index: {}]
  %s6 = sld [smem:[#allocation0]]
  $region30: #{net_forward.1} parent=0
    _
  %s8 = ssub.s32 1, %s6
  %s9 = scalar_select 0, %s8, %s6
  $region1: #{net_forward.1} parent=0
    #allocation2 [shape = 'u8[4096]{0}', space=vmem, size = 0x1000, scoped, tag = 'output window, operand 0, single buffered']
    #allocation3 [shape = 's32[1]{0}', space=sflag, size = 0x4, scoped, tag = 'scoped memory for net_forward.1']
    %10 = vsyncpa [#allocation3], 0
    // Predicated region
    $region2: #{net_forward.1} parent=1 // pred_check
      _
    $region3: #{net_forward.1} parent=1 // pred_check_branch
      %12 = sbr.rel (0) target = $region5
    $region4: #{net_forward.1} parent=1 // pred_region
      _
    $region5: #{net_forward.1} parent=1 // pred_fallthru
      _
    // Predicated region
    $region6: #{net_forward.1} parent=1 // pred_check
      _
    $region7: #{net_forward.1} parent=1 // pred_check_branch
      %14 = sbr.rel (0) target = $region9
    $region8: #{net_forward.1} parent=1 // pred_region
      _
    $region9: #{net_forward.1} parent=1 // pred_fallthru
      _
    // Predicated region
    $region10: #{net_forward.1} parent=1 // pred_check
      _
    $region11: #{net_forward.1} parent=1 // pred_check_branch
      %16 = sbr.rel (0) target = $region13
    $region12: #{net_forward.1} parent=1 // pred_region
      _
    $region13: #{net_forward.1} parent=1 // pred_fallthru
      _
    // Predicated region
    $region14: #{net_forward.1} parent=1 // pred_check
      _
    $region15: #{net_forward.1} parent=1 // pred_check_branch
      %18 = sbr.rel (0) target = $region17
    $region16: #{net_forward.1} parent=1 // pred_region
      _
    $region17: #{net_forward.1} parent=1 // pred_fallthru
      _
    // Predicated region
    $region18: #{net_forward.1} parent=1 // pred_check
      _
    $region19: #{net_forward.1} parent=1 // pred_check_branch
      %20 = sbr.rel (0) target = $region21
    $region20: #{net_forward.1} parent=1 // pred_region
      _
    $region21: #{net_forward.1} parent=1 // pred_fallthru
      _
    %v21 = vld [vmem:[%s0] sm:$0xff]
    %v22 = vld [vmem:[%s1] sm:$0xff]
    %v23 = vld [vmem:[%s1 + $0x8] sm:$0xff]
    %v24 = vld [vmem:[%s1 + $0x10] sm:$0xff]
    %v25 = vld [vmem:[%s1 + $0x18] sm:$0xff]
    %v26 = vld [vmem:[%s2] sm:$0x1]
    %v28 = vlaneseq
    %v29 = vshrl.u32 %v28, 7
    %v30 = vsub.s32 0, %v29
    %v31 = vrot.slane %v26, %v30
    %vm33 = vcmask 261120
    %v35 = vsel %vm33, %v21, 0
    %37 = vmatprep.subr.mxu0 0.0
    %38 = vmatpush1.msra.mxu0 %v22
    %39 = vmatprep.subr.mxu0 0.0
    %40 = vmatpush1.msra.mxu0 %v23
    %41 = vmatprep.subr.mxu0 0.0
    %42 = vmatpush1.msra.mxu0 %v24
    %43 = vmatprep.subr.mxu0 0.0
    %44 = vmatpush1.msra.mxu0 %v25
    %45 = vmatprep.subr.mxu0 0.0
    %46 = vmatpush1.msra.mxu0 0.0
    %47 = vmatprep.subr.mxu0 0.0
    %48 = vmatpush1.msra.mxu0 0.0
    %49 = vmatprep.subr.mxu0 0.0
    %50 = vmatpush1.msra.mxu0 0.0
    %51 = vmatprep.subr.mxu0 0.0
    %52 = vmatpush1.msra.mxu0 0.0
    %53 = vmatprep.subr.mxu0 0.0
    %54 = vmatpush1.msra.mxu0 0.0
    %55 = vmatprep.subr.mxu0 0.0
    %56 = vmatpush1.msra.mxu0 0.0
    %57 = vmatprep.subr.mxu0 0.0
    %58 = vmatpush1.msra.mxu0 0.0
    %59 = vmatprep.subr.mxu0 0.0
    %60 = vmatpush1.msra.mxu0 0.0
    %61 = vmatprep.subr.mxu0 0.0
    %62 = vmatpush1.msra.mxu0 0.0
    %63 = vmatprep.subr.mxu0 0.0
    %64 = vmatpush1.msra.mxu0 0.0
    %65 = vmatprep.subr.mxu0 0.0
    %66 = vmatpush1.msra.mxu0 0.0
    %67 = vmatprep.subr.mxu0 0.0
    %68 = vmatpush1.msra.mxu0 0.0
    %69 = vmatprep.subr.mxu0 0.0
    %70 = vmatpush1.msra.mxu0 0.0
    %71 = vmatprep.subr.mxu0 0.0
    %72 = vmatpush1.msra.mxu0 0.0
    %73 = vmatprep.subr.mxu0 0.0
    %74 = vmatpush1.msra.mxu0 0.0
    %75 = vmatprep.subr.mxu0 0.0
    %76 = vmatpush1.msra.mxu0 0.0
    %77 = vmatprep.subr.mxu0 0.0
    %78 = vmatpush1.msra.mxu0 0.0
    %79 = vmatprep.subr.mxu0 0.0
    %80 = vmatpush1.msra.mxu0 0.0
    %81 = vmatprep.subr.mxu0 0.0
    %82 = vmatpush1.msra.mxu0 0.0
    %83 = vmatprep.subr.mxu0 0.0
    %84 = vmatpush1.msra.mxu0 0.0
    %85 = vmatprep.subr.mxu0 0.0
    %86 = vmatpush1.msra.mxu0 0.0
    %87 = vmatprep.subr.mxu0 0.0
    %88 = vmatpush1.msra.mxu0 0.0
    %89 = vmatprep.subr.mxu0 0.0
    %90 = vmatpush1.msra.mxu0 0.0
    %91 = vmatprep.subr.mxu0 0.0
    %92 = vmatpush1.msra.mxu0 0.0
    %93 = vmatprep.subr.mxu0 0.0
    %94 = vmatpush1.msra.mxu0 0.0
    %95 = vmatprep.subr.mxu0 0.0
    %96 = vmatpush1.msra.mxu0 0.0
    %97 = vmatprep.subr.mxu0 0.0
    %98 = vmatpush1.msra.mxu0 0.0
    %99 = vmatprep.subr.mxu0 0.0
    %100 = vmatpush1.msra.mxu0 0.0
    %101 = vmatprep.mubr.f32.mxu0 0.0
    %102 = vmatmul.mubr.f32.gmra.mrb[0].mxu0 %v35
    %v103 = vpop.f32.mrb[0].mxu0
    %v104 = vadd.f32 %v31, %v103
    %v105 = vpop.f32.mrb[0].mxu0
    %106 = vdwg.mxu0
    %v107 = vmax.f32 %v104, 0.0
    %v108 = vld [vmem:[%s3] sm:$0xff]
    %v109 = vld [vmem:[%s3 + $0x8] sm:$0xff]
    %v110 = vld [vmem:[%s3 + $0x10] sm:$0xff]
    %v111 = vld [vmem:[%s3 + $0x18] sm:$0xff]
    %v112 = vld [vmem:[%s3 + $0x20] sm:$0xff]
    %v113 = vld [vmem:[%s3 + $0x28] sm:$0xff]
    %v114 = vld [vmem:[%s3 + $0x30] sm:$0xff]
    %v115 = vld [vmem:[%s3 + $0x38] sm:$0xff]
    %v116 = vld [vmem:[%s3 + $0x40] sm:$0xff]
    %v117 = vld [vmem:[%s3 + $0x48] sm:$0xff]
    %v118 = vld [vmem:[%s3 + $0x50] sm:$0xff]
    %v119 = vld [vmem:[%s3 + $0x58] sm:$0xff]
    %v120 = vld [vmem:[%s3 + $0x60] sm:$0xff]
    %v121 = vld [vmem:[%s3 + $0x68] sm:$0xff]
    %v122 = vld [vmem:[%s3 + $0x70] sm:$0xff]
    %v123 = vld [vmem:[%s3 + $0x78] sm:$0xff]
    %v124 = vld [vmem:[%s4] sm:$0x1]
    %v126 = vlaneseq
    %v127 = vshrl.u32 %v126, 7
    %v128 = vsub.s32 0, %v127
    %v129 = vrot.slane %v124, %v128
    %131 = vmatprep.subr.mxu0 0.0
    %132 = vmatpush1.msra.mxu0 %v108
    %133 = vmatprep.subr.mxu0 0.0
    %134 = vmatpush1.msra.mxu0 %v109
    %135 = vmatprep.subr.mxu0 0.0
    %136 = vmatpush1.msra.mxu0 %v110
    %137 = vmatprep.subr.mxu0 0.0
    %138 = vmatpush1.msra.mxu0 %v111
    %139 = vmatprep.subr.mxu0 0.0
    %140 = vmatpush1.msra.mxu0 %v112
    %141 = vmatprep.subr.mxu0 0.0
    %142 = vmatpush1.msra.mxu0 %v113
    %143 = vmatprep.subr.mxu0 0.0
    %144 = vmatpush1.msra.mxu0 %v114
    %145 = vmatprep.subr.mxu0 0.0
    %146 = vmatpush1.msra.mxu0 %v115
    %147 = vmatprep.subr.mxu0 0.0
    %148 = vmatpush1.msra.mxu0 %v116
    %149 = vmatprep.subr.mxu0 0.0
    %150 = vmatpush1.msra.mxu0 %v117
    %151 = vmatprep.subr.mxu0 0.0
    %152 = vmatpush1.msra.mxu0 %v118
    %153 = vmatprep.subr.mxu0 0.0
    %154 = vmatpush1.msra.mxu0 %v119
    %155 = vmatprep.subr.mxu0 0.0
    %156 = vmatpush1.msra.mxu0 %v120
    %157 = vmatprep.subr.mxu0 0.0
    %158 = vmatpush1.msra.mxu0 %v121
    %159 = vmatprep.subr.mxu0 0.0
    %160 = vmatpush1.msra.mxu0 %v122
    %161 = vmatprep.subr.mxu0 0.0
    %162 = vmatpush1.msra.mxu0 %v123
    %163 = vmatprep.subr.mxu0 0.0
    %164 = vmatpush1.msra.mxu0 0.0
    %165 = vmatprep.subr.mxu0 0.0
    %166 = vmatpush1.msra.mxu0 0.0
    %167 = vmatprep.subr.mxu0 0.0
    %168 = vmatpush1.msra.mxu0 0.0
    %169 = vmatprep.subr.mxu0 0.0
    %170 = vmatpush1.msra.mxu0 0.0
    %171 = vmatprep.subr.mxu0 0.0
    %172 = vmatpush1.msra.mxu0 0.0
    %173 = vmatprep.subr.mxu0 0.0
    %174 = vmatpush1.msra.mxu0 0.0
    %175 = vmatprep.subr.mxu0 0.0
    %176 = vmatpush1.msra.mxu0 0.0
    %177 = vmatprep.subr.mxu0 0.0
    %178 = vmatpush1.msra.mxu0 0.0
    %179 = vmatprep.subr.mxu0 0.0
    %180 = vmatpush1.msra.mxu0 0.0
    %181 = vmatprep.subr.mxu0 0.0
    %182 = vmatpush1.msra.mxu0 0.0
    %183 = vmatprep.subr.mxu0 0.0
    %184 = vmatpush1.msra.mxu0 0.0
    %185 = vmatprep.subr.mxu0 0.0
    %186 = vmatpush1.msra.mxu0 0.0
    %187 = vmatprep.subr.mxu0 0.0
    %188 = vmatpush1.msra.mxu0 0.0
    %189 = vmatprep.subr.mxu0 0.0
    %190 = vmatpush1.msra.mxu0 0.0
    %191 = vmatprep.subr.mxu0 0.0
    %192 = vmatpush1.msra.mxu0 0.0
    %193 = vmatprep.subr.mxu0 0.0
    %194 = vmatpush1.msra.mxu0 0.0
    %195 = vmatprep.mubr.f32.mxu0 0.0
    %196 = vmatmul.mubr.f32.gmra.mrb[0].mxu0 %v107
    %v197 = vpop.f32.mrb[0].mxu0
    %v198 = vadd.f32 %v129, %v197
    %v199 = vpop.f32.mrb[0].mxu0
    %200 = vdwg.mxu0
    %v201 = vsel %vm33, %v198, -inf
    %202 = vmax.xlane.f32.xlu0 %v201
    %v203 = vpop.xlane.xlu0 %202
    %v204 = vsub.f32 %v198, %v203
    %v205 = vmul.f32 %v204, 1.442695
    %v206 = vpow.pop %v205
    %v207 = vsel %vm33, %v206, 0.0
    %208 = vadd.xlane.f32.xlu0 %v207
    %v209 = vpop.xlane.xlu0 %208
    %v210 = vlog2.pop %v209
    %v211 = vmul.f32 %v210, 0.6931472
    %v212 = vadd.f32 %v203, %v211
    %v213 = vsub.f32 %v198, %v212
    %214 = vst.msk [vmem:[#allocation2] sm:$0xff] %vm33, %v213
    // Predicated region
    $region22: #{net_forward.1} parent=1 // pred_check
      _
    $region23: #{net_forward.1} parent=1 // pred_check_branch
      %216 = sbr.rel (0) target = $region25
    $region24: #{net_forward.1} parent=1 // pred_region
      %s218 = ssub.s32 128, 128
      %219 = vsyncadd [#allocation3], %s218
      %s221 = sshll.u32 [#allocation2], 4
      %s222 = int_to_ptr.vmem [resolvable:$true] %s221
      %224 = dma.vmem_to_hbm [thread:$0]  %s222, 128, %s5, [#allocation3]
    $region25: #{net_forward.1} parent=1 // pred_fallthru
      _
    // Predicated region
    $region26: #{net_forward.1} parent=1 // pred_check
      _
    $region27: #{net_forward.1} parent=1 // pred_check_branch
      %226 = sbr.rel (0) target = $region29
    $region28: #{net_forward.1} parent=1 // pred_region
      %227 = dma.done [#allocation3], 128
    $region29: #{net_forward.1} parent=1 // pred_fallthru
      _
    %228 = vsyncpa [#allocation3], 1

</llo_original>
